<compile_context>
chip_gen: v7x
topology: tpu7x:2x2x1
jax: 0.10.0
libtpu: 0.0.40
codegen_flags: <defaults>
</compile_context>

<pallas_src>
import math
import numpy as np
import jax
import jax.numpy as jnp
from jax.experimental import pallas as pl
from jax.experimental.pallas import tpu as pltpu


def _fanout_kernel(enc_ref, out_ref):
    """Fan the batch-invariant encoding tile out to TB batch elements.

    enc_ref : (C, TS)      encoding tile (output dtype)
    out_ref : (TB, C, TS)  output tile for TB consecutive batch indices
    """
    out_ref[...] = jnp.broadcast_to(enc_ref[...][None], out_ref.shape)


def _build_tables(C, X, Y):
    """Tiny sin/cos tables: tab_x (ch_half, X), tab_y (ch_half, Y). O(C*(X+Y))."""
    ch_half = int(math.ceil(C / 2))
    n_freq = len(range(0, ch_half, 2))
    # The reference PyTorch module raises a shape-mismatch error whenever
    # ceil(C/2) is odd (i.e. C % 4 not in {0, 3}); mirror that restriction.
    assert 2 * n_freq == ch_half, (
        "PositionalEncoding2D reference errors when ceil(C/2) is odd; "
        "use C % 4 in {0, 3}.")
    inv_freq = 1.0 / (10000.0 ** (np.arange(0, ch_half, 2, dtype=np.float32)
                                  / np.float32(ch_half)))
    sx = np.outer(np.arange(X, dtype=np.float32), inv_freq)   # (X, n_freq)
    sy = np.outer(np.arange(Y, dtype=np.float32), inv_freq)   # (Y, n_freq)
    tab_x = np.concatenate([np.sin(sx), np.cos(sx)], axis=1).T.copy()  # (ch_half, X)
    tab_y = np.concatenate([np.sin(sy), np.cos(sy)], axis=1).T.copy()  # (ch_half, Y)
    return ch_half, tab_x, tab_y


def positional_encoding_permute_2d(x, *, target_out_bytes=8 * 1024 * 1024):
    """x: (B, C, X, Y) NCHW. Returns positional encoding (B, C, X, Y), dtype of x."""
    B, C, X, Y = x.shape
    dtype = x.dtype
    itemsize = jnp.dtype(dtype).itemsize
    ch_half, tab_x, tab_y = _build_tables(C, X, Y)
    cy = C - ch_half
    S = X * Y

    # One-time, batch-invariant expansion of the tiny tables into the NCHW
    # encoding plane, already flattened spatially and already in the OUTPUT
    # dtype (no f32 detour, no per-step astype in the kernel).
    tab_x_j = jnp.asarray(tab_x, dtype=dtype)          # (ch_half, X)
    tab_y_j = jnp.asarray(tab_y[:cy], dtype=dtype)     # (cy, Y); channels >= C sliced off
    plane = jnp.concatenate(
        [jnp.broadcast_to(tab_x_j[:, :, None], (ch_half, X, Y)),   # depends on x only
         jnp.broadcast_to(tab_y_j[:, None, :], (cy, X, Y))],       # depends on y only
        axis=0).reshape(C, S)                                      # (C, S), output dtype

    # ---- tiling: target ~target_out_bytes of OUTPUT per grid step ----------
    plane_bytes = C * S * itemsize
    if plane_bytes <= target_out_bytes:
        # Whole plane fits in one tile; pack several batch elements per step.
        TS = S
        TB = max(1, target_out_bytes // plane_bytes)
    else:
        # Split the spatial axis into lane-aligned (multiple-of-128) tiles.
        TS = max(128, (target_out_bytes // (C * itemsize)) // 128 * 128)
        if TS >= S:
            TS = S
        TB = 1
    TB = min(TB, B)
    if B >= 2:
        TB = min(TB, -(-B // 2))   # keep >= 2 batch blocks so v7x megacore has work

    n_s = pl.cdiv(S, TS)
    n_b = pl.cdiv(B, TB)

    # VMEM budget: (enc + out) blocks, padded to (8, 128) tiles, double-buffered,
    # plus slack.  Capped at 48 MiB so it fits v7x's 64 MiB physical VMEM.
    c_pad = -(-C // 8) * 8
    ts_pad = -(-TS // 128) * 128
    block_bytes = (1 + TB) * c_pad * ts_pad * itemsize
    vmem_limit = int(min(48 << 20, max(4 << 20, 2 * block_bytes + (2 << 20))))

    out_flat = pl.pallas_call(
        _fanout_kernel,
        out_shape=jax.ShapeDtypeStruct((B, C, S), dtype),
        # Batch is the innermost grid axis: the enc block index (0, s) is
        # unchanged across consecutive b steps, so Pallas fetches each enc
        # tile into VMEM once and only the B*C*S output writes hit HBM.
        grid=(n_s, n_b),
        in_specs=[pl.BlockSpec((C, TS), lambda s, b: (0, s))],
        out_specs=pl.BlockSpec((TB, C, TS), lambda s, b: (b, 0, s)),
        compiler_params=pltpu.CompilerParams(
            dimension_semantics=("parallel", "parallel"),
            vmem_limit_bytes=vmem_limit),
    )(plane)

    # Contiguous reshape back to NCHW (free).
    return out_flat.reshape(B, C, X, Y)


def _reference(x):
    """Pure-numpy port of the PyTorch module for verification."""
    B, C, X, Y = x.shape
    ch_half = int(math.ceil(C / 2))
    inv_freq = 1.0 / (10000.0 ** (np.arange(0, ch_half, 2, dtype=np.float32) / ch_half))
    pos_x = np.arange(X, dtype=np.float32)
    pos_y = np.arange(Y, dtype=np.float32)
    sin_inp_x = np.einsum('i,j->ij', pos_x, inv_freq)
    sin_inp_y = np.einsum('i,j->ij', pos_y, inv_freq)
    emb_x = np.concatenate([np.sin(sin_inp_x), np.cos(sin_inp_x)], axis=-1)[:, None, :]
    emb_y = np.concatenate([np.sin(sin_inp_y), np.cos(sin_inp_y)], axis=-1)
    emb = np.zeros((X, Y, 2 * ch_half), dtype=np.float32)
    emb[:, :, :ch_half] = emb_x
    emb[:, :, ch_half:2 * ch_half] = emb_y
    out = np.broadcast_to(emb[None, :, :, :C], (B, X, Y, C))
    return np.transpose(out, (0, 3, 1, 2)).astype(x.dtype)


if __name__ == "__main__":
    key = jax.random.PRNGKey(0)

    def _check(B, C, X, Y, **kw):
        x = jax.random.normal(key, (B, C, X, Y), dtype=jnp.float32)
        enc = jax.block_until_ready(positional_encoding_permute_2d(x, **kw))
        ref = _reference(np.asarray(x))
        np.testing.assert_allclose(np.asarray(enc), ref, rtol=1e-5, atol=1e-5)
        assert enc.shape == (B, C, X, Y) and enc.dtype == x.dtype

    # Main shape (matches the module's expected small config).
    _check(2, 4, 16, 16)
    # Multi-batch output blocks (TB = 2): exercises the in-kernel broadcast path.
    _check(4, 4, 16, 16, target_out_bytes=8192)
    # Ragged spatial tiling (S = 272 split into 128-lane tiles, masked tail block).
    _check(2, 4, 16, 17, target_out_bytes=2048)

    print("KERNEL_OK")
</pallas_src>

<mosaic_0001>
module attributes {stable_mosaic.version = 11 : i64} {
  func.func @_fanout_kernel(%arg0: i32, %arg1: i32, %arg2: memref<4x256xf32, #tpu.memory_space<vmem>>, %arg3: memref<1x4x256xf32, #tpu.memory_space<vmem>>) attributes {dimension_semantics = [#tpu.dimension_semantics<parallel>, #tpu.dimension_semantics<parallel>], iteration_bounds = array<i64: 1, 2>, scalar_prefetch = 0 : i64, scratch_operands = 0 : i64, tpu.core_type = #tpu.core_type<tc>, window_params = [{transform_indices = @transform_0, window_bounds = array<i64: 4, 256>}, {transform_indices = @transform_1, window_bounds = array<i64: 1, 4, 256>}]} {
    %c0 = arith.constant 0 : index
    %c0_0 = arith.constant 0 : index
    %0 = vector.load %arg2[%c0, %c0_0] : memref<4x256xf32, #tpu.memory_space<vmem>>, vector<4x256xf32>
    %1 = vector.shape_cast %0 : vector<4x256xf32> to vector<1x4x256xf32>
    %c0_1 = arith.constant 0 : index
    %c0_2 = arith.constant 0 : index
    %c0_3 = arith.constant 0 : index
    %2 = vector.load %arg3[%c0_1, %c0_2, %c0_3] : memref<1x4x256xf32, #tpu.memory_space<vmem>>, vector<1x4x256xf32>
    tpu.vector_store %arg3[%c0_1, %c0_2, %c0_3], %1 {strides = array<i32>} : memref<1x4x256xf32, #tpu.memory_space<vmem>>, vector<1x4x256xf32>,
    return
  }
  func.func @transform_0(%arg0: i32, %arg1: i32) -> (i32, i32) {
    %c0_i32 = arith.constant 0 : i32
    %c0_i32_0 = arith.constant 0 : i32
    return %c0_i32, %arg0 : i32, i32
  }
  func.func @transform_1(%arg0: i32, %arg1: i32) -> (i32, i32, i32) {
    %c0_i32 = arith.constant 0 : i32
    %c0_i32_0 = arith.constant 0 : i32
    return %arg1, %c0_i32, %arg0 : i32, i32, i32
  }
}

</mosaic_0001>

<llo_original>
// kernel: tpu_custom_call.1
$region0: #{tpu_custom_call.1}
  #allocation0 [shape = 'u32[]', space=smem, size = 0x4, offset = 0x4, fixed_abs, tag = 'smem constant byte address 0x4 - core index']
  #allocation1 [shape = 'u32[144,128]{1,0:T(1,128)}', space=vmem, size = 0x12000, scoped, tag = 'internal scratch']
  %s0 = inlined_call_operand.hbm [shape: f32[4,256], index: 0, kind: input, shape index: {}]
  %s1 = inlined_call_operand.hbm [shape: f32[2,4,256], index: 1, kind: output, shape index: {}]
  %s2 = sld [smem:[#allocation0]]
  $region41: #{tpu_custom_call.1} parent=0
    _
  %s4 = ssub.s32 1, %s2
  %s5 = scalar_select 0, %s4, %s2
  $region1: #{tpu_custom_call.1} parent=0
    #allocation2 [shape = 'u8[4096]{0}', space=vmem, size = 0x1000, scoped, tag = 'input window, operand 0, single buffered']
    #allocation3 [shape = 's32[2]{0}', space=sflag, size = 0x8, scoped, tag = 'scoped memory for tpu_custom_call.1']
    #allocation4 [shape = 's32[2]{0}', space=sflag, size = 0x8, scoped, tag = 'scoped memory for tpu_custom_call.1']
    #allocation5 [shape = 'u8[8192]{0}', space=vmem, size = 0x2000, scoped, tag = 'output window, operand 0']
    %6 = vsyncpa [#allocation3], 0
    %7 = vsyncpa [#allocation4], 0
    %s8 = scalar_lea.sflag [#allocation4], 1
    %9 = vsyncpa %s8, 0
    loop: start=0, step=1, limit=4
    $region2: #{tpu_custom_call.1} parent=1 // loop_pre_header
      _
    $region3: #{tpu_custom_call.1} parent=1 // loop_header
      %s11 = sphi 0, %s15
      %p12 = scmp.ge.s32.totalorder %s11, 4
      %s18 = sphi 0, %s30
      %s19 = sphi 0, %s26
      %s20 = sphi 0, %s18
      %s21 = sphi 0, %s19
      %s22 = sphi 0, %s20
      %s23 = sphi 0, %s21
      %s33 = sphi 0, %s35
      %s36 = sphi 0, %s33
      %s37 = sphi 0, %s36
      %s53 = sphi 0, %s37
      %s61 = sphi 0, %s63
      %s64 = sphi 0, %s61
      %s65 = sphi 0, %s64
      %s81 = sphi 0, %s65
    $region4: #{tpu_custom_call.1} parent=1 // loop_header_branch
      %14 = sbr.rel (%p12) target = $region8
    $region5: #{tpu_custom_call.1} parent=1 // loop_body
      %s16 = ssub.s32 %s11, 1
      %s17 = ssub.s32 %s11, 2
      %s24 = sadd.s32 1, %s19
      %p25 = scmp.ge.s32.totalorder %s24, 2
      %s26 = scalar_select %p25, 0, %s24
      %s27 = sadd.s32 1, %s18
      %s28 = scalar_select %p25, %s27, %s18
      %p29 = scmp.ge.s32.totalorder %s28, 1
      %s30 = scalar_select %p29, 0, %s28
      %s31 = ssub.s32 %s18, %s30
      %p32 = scmp.eq.s32.totalorder %s31, 0
      %s34 = sadd.s32 %s33, 1
      %s35 = scalar_select %p32, %s33, %s34
      %p38 = pneg %p32
      %p39 = scmp.eq.s32.totalorder %s11, 1
      %p40 = por %p38, %p39
      %p41 = scmp.ne.s32.totalorder %s33, %s36
      %p42 = scmp.eq.s32.totalorder %s11, 0
      %p43 = por %p41, %p42
      %p44 = scmp.ne.s32.totalorder %s33, %s36
      %p45 = scmp.eq.s32.totalorder %s16, 1
      %p46 = por %p44, %p45
      %p47 = scmp.ne.s32.totalorder %s36, %s37
      %p48 = scmp.eq.s32.totalorder %s16, 0
      %p49 = por %p47, %p48
      %p50 = scmp.ne.s32.totalorder %s36, %s37
      %p51 = scmp.eq.s32.totalorder %s17, 1
      %p52 = por %p50, %p51
      %p54 = scmp.ne.s32.totalorder %s37, %s53
      %p55 = scmp.eq.s32.totalorder %s17, 0
      %p56 = por %p54, %p55
      %s57 = ssub.s32 %s19, %s26
      %s58 = ssub.s32 %s18, %s30
      %s59 = sor.u32 %s57, %s58
      %p60 = scmp.eq.s32.totalorder %s59, 0
      %s62 = sadd.s32 %s61, 1
      %s63 = scalar_select %p60, %s61, %s62
      %p66 = pneg %p60
      %p67 = scmp.eq.s32.totalorder %s11, 1
      %p68 = por %p66, %p67
      %p69 = scmp.ne.s32.totalorder %s61, %s64
      %p70 = scmp.eq.s32.totalorder %s11, 0
      %p71 = por %p69, %p70
      %p72 = scmp.ne.s32.totalorder %s61, %s64
      %p73 = scmp.eq.s32.totalorder %s16, 1
      %p74 = por %p72, %p73
      %p75 = scmp.ne.s32.totalorder %s64, %s65
      %p76 = scmp.eq.s32.totalorder %s16, 0
      %p77 = por %p75, %p76
      %p78 = scmp.ne.s32.totalorder %s64, %s65
      %p79 = scmp.eq.s32.totalorder %s17, 1
      %p80 = por %p78, %p79
      %p82 = scmp.ne.s32.totalorder %s65, %s81
      %p83 = scmp.eq.s32.totalorder %s17, 0
      %p84 = por %p82, %p83
      %p85 = scmp.le.s32.totalorder 1, %s11
      %p86 = scmp.lt.s32.totalorder %s11, 3
      %p87 = pnand %p85, %p86
      %p88 = pneg %p87
      // Predicated region
      $region9: #{tpu_custom_call.1} parent=5 // pred_check
        _
      $region10: #{tpu_custom_call.1} parent=5 // pred_check_branch
        %90 = sbr.rel (%p87) target = $region12
      $region11: #{tpu_custom_call.1} parent=5 // pred_region
        %s91 = ssub.s32 %s11, 1
        // Predicated region
        $region13: #{tpu_custom_call.1} parent=11 // pred_check
          %p92 = pneg %p49
        $region14: #{tpu_custom_call.1} parent=11 // pred_check_branch
          %94 = sbr.rel (%p92) target = $region16
        $region15: #{tpu_custom_call.1} parent=11 // pred_region
          %s95 = smul.u32 2, %s20
          %s97 = ssub.s32 128, 128
          %98 = vsyncadd [#allocation3], %s97
          %s99 = smul.addr %s95, 64
          %s100 = scalar_lea.hbm %s0, %s99
          %s102 = sshll.u32 [#allocation2], 4
          %s103 = int_to_ptr.vmem [resolvable:$true] %s102
          %105 = dma.hbm_to_vmem [thread:$0]  %s100, 128, %s103, [#allocation3]
        $region16: #{tpu_custom_call.1} parent=11 // pred_fallthru
          _
      $region12: #{tpu_custom_call.1} parent=5 // pred_fallthru
        _
      %p106 = scmp.lt.s32.totalorder %s11, 2
      // Predicated region
      $region17: #{tpu_custom_call.1} parent=5 // pred_check
        %p107 = pneg %p106
      $region18: #{tpu_custom_call.1} parent=5 // pred_check_branch
        %109 = sbr.rel (%p107) target = $region20
      $region19: #{tpu_custom_call.1} parent=5 // pred_region
        _
      $region20: #{tpu_custom_call.1} parent=5 // pred_fallthru
        _
      %p110 = scmp.le.s32.totalorder 1, %s11
      %p111 = scmp.lt.s32.totalorder %s11, 3
      %p112 = pnand %p110, %p111
      %p113 = pneg %p112
      // Predicated region
      $region21: #{tpu_custom_call.1} parent=5 // pred_check
        _
      $region22: #{tpu_custom_call.1} parent=5 // pred_check_branch
        %115 = sbr.rel (%p112) target = $region24
      $region23: #{tpu_custom_call.1} parent=5 // pred_region
        %s116 = ssub.s32 %s11, 1
        // Predicated region
        $region25: #{tpu_custom_call.1} parent=23 // pred_check
          %p117 = pneg %p49
        $region26: #{tpu_custom_call.1} parent=23 // pred_check_branch
          %119 = sbr.rel (%p117) target = $region28
        $region27: #{tpu_custom_call.1} parent=23 // pred_region
          %120 = dma.done [#allocation3], 128
        $region28: #{tpu_custom_call.1} parent=23 // pred_fallthru
          _
        %p121 = pneg %p49
        %p122 = pneg %p46
        %p123 = pneg %p77
        %p124 = pneg %p74
        %s125 = sand.u32 %s64, 1
        %s126 = scalar_lea.sflag [#allocation4], %s125
        %s127 = sand.u32 %s64, 1
        %s128 = smul.addr %s127, 8
        %s129 = scalar_lea.vmem [#allocation5], %s128
        %s130 = smul.u32 2, %s20
        %s131 = smul.u32 2, %s20
        %v132 = vld [vmem:[#allocation2] sm:$0xff]
        %133 = vst [vmem:[%s129] sm:$0xff] %v132
        %s134 = sand.u32 %s64, 1
        %s135 = scalar_lea.sflag [#allocation4], %s134
        %s136 = sand.u32 %s64, 1
        %s137 = smul.addr %s136, 8
        %s138 = scalar_lea.vmem [#allocation5], %s137
        // Predicated region
        $region29: #{tpu_custom_call.1} parent=23 // pred_check
          %p139 = pneg %p74
        $region30: #{tpu_custom_call.1} parent=23 // pred_check_branch
          %141 = sbr.rel (%p139) target = $region32
        $region31: #{tpu_custom_call.1} parent=23 // pred_region
          %s142 = smul.u32 2, %s20
          %s144 = ssub.s32 128, 128
          %145 = vsyncadd %s135, %s144
          %s146 = smul.addr %s21, 2
          %s147 = sadd.s32 %s142, %s146
          %s148 = smul.addr %s147, 64
          %s149 = scalar_lea.hbm %s1, %s148
          %s151 = sshll.u32 %s138, 4
          %s152 = int_to_ptr.vmem [resolvable:$true] %s151
          %154 = dma.vmem_to_hbm [thread:$0]  %s152, 128, %s149, %s135
        $region32: #{tpu_custom_call.1} parent=23 // pred_fallthru
          _
      $region24: #{tpu_custom_call.1} parent=5 // pred_fallthru
        _
      %p155 = scmp.le.s32.totalorder 2, %s11
      // Predicated region
      $region33: #{tpu_custom_call.1} parent=5 // pred_check
        %p156 = pneg %p155
      $region34: #{tpu_custom_call.1} parent=5 // pred_check_branch
        %158 = sbr.rel (%p156) target = $region36
      $region35: #{tpu_custom_call.1} parent=5 // pred_region
        %s159 = ssub.s32 %s11, 2
        // Predicated region
        $region37: #{tpu_custom_call.1} parent=35 // pred_check
          %p160 = pneg %p80
        $region38: #{tpu_custom_call.1} parent=35 // pred_check_branch
          %162 = sbr.rel (%p160) target = $region40
        $region39: #{tpu_custom_call.1} parent=35 // pred_region
          %s163 = sand.u32 %s65, 1
          %s164 = scalar_lea.sflag [#allocation4], %s163
          %s165 = sand.u32 %s65, 1
          %s166 = smul.addr %s165, 8
          %s167 = scalar_lea.vmem [#allocation5], %s166
          %168 = dma.done %s164, 128
        $region40: #{tpu_custom_call.1} parent=35 // pred_fallthru
          _
      $region36: #{tpu_custom_call.1} parent=5 // pred_fallthru
        _
    $region6: #{tpu_custom_call.1} parent=1 // loop_footer
      %s15 = sadd.s32 1, %s11
    $region7: #{tpu_custom_call.1} parent=1 // loop_footer_branch
      %10 = sbr.rel target = $region3
    $region8: #{tpu_custom_call.1} parent=1 // loop_exit
      _
    %169 = vsyncpa [#allocation3], 1
    %s170 = scalar_lea.sflag [#allocation3], 1
    %171 = vsyncpa %s170, 1
    %172 = vsyncpa [#allocation4], 1
    %s173 = scalar_lea.sflag [#allocation4], 1
    %174 = vsyncpa %s173, 1

</llo_original>
